<compile_context>
chip_gen: v7x
topology: tpu7x:2x2x1
jax: 0.10.0
libtpu: 0.0.40
codegen_flags: <defaults>
</compile_context>

<pallas_src>
import functools

import jax
import jax.numpy as jnp
from jax.experimental import pallas as pl
from jax.experimental.pallas import tpu as pltpu


# ----------------------------- Pallas kernel -----------------------------

def _fixed_mlp_kernel(pT_ref, w1t_ref, b1t_ref, w2t_ref, b2t_ref, oT_ref):
    # pT_ref : (D_IN, TN)     tile of points, points on the LANE axis
    # w1t_ref: (H, D_IN)      first layer with the Fixed placement folded in
    # b1t_ref: (H, 1)         first-layer bias (includes fixed-value contribution)
    # w2t_ref: (K_PAD, H)     second layer, output features padded to sublane mult.
    # b2t_ref: (K_PAD, 1)
    # oT_ref : (K_PAD, TN)    lane- and sublane-dense output tile
    pT = pT_ref[...]
    w1t = w1t_ref[...]
    d_in = pT.shape[0]

    # ---- layer 1: contraction over tiny d_in ----
    if d_in <= 8:
        # VPU broadcast-FMAs: avoid pushing a K=d_in matmul through the MXU.
        acc = b1t_ref[...]                       # (H, 1) broadcasts to (H, TN)
        for i in range(d_in):                    # static, unrolled
            acc = acc + w1t[:, i:i + 1] * pT[i:i + 1, :]
    else:
        acc = jnp.dot(w1t, pT, preferred_element_type=jnp.float32) + b1t_ref[...]
    h = jnp.tanh(acc)                            # (H, TN)  -- EUP

    # ---- layer 2: MXU matmul, lane-dense output ----
    outT = jnp.dot(w2t_ref[...], h,
                   preferred_element_type=jnp.float32) + b2t_ref[...]
    oT_ref[...] = outT.astype(oT_ref.dtype)


# ----------------------------- wrapper ------------------------------------

def make_fixed_module(idx, values, d_in, hidden, d_out, key):
    """Build deterministic params for Fixed(MLP, idx, values).

    Returns a dict holding both the raw MLP params (used by the pure-JAX
    reference) and the folded/transposed/padded params consumed by the kernel.
    All folding/padding happens ONCE here, never per forward.
    """
    total = d_in + len(idx)
    idx = tuple(int(i) for i in idx)
    idx_arr = jnp.array(idx)

    # Placement matrix E (d_in, total) and fixed-value vector c (1, total).
    fixed_mask = jnp.zeros((total,), dtype=bool).at[idx_arr].set(True)
    free_cols = jnp.nonzero(~fixed_mask, size=d_in)[0]          # static
    embed = jnp.zeros((d_in, total), jnp.float32)
    embed = embed.at[jnp.arange(d_in), free_cols].set(1.0)
    cvec = jnp.zeros((1, total), jnp.float32)
    cvec = cvec.at[0, idx_arr].set(jnp.array(values, jnp.float32))

    # Deterministic MLP params.
    k1, k2, k3, k4 = jax.random.split(key, 4)
    w1 = jax.random.normal(k1, (total, hidden), jnp.float32) * 0.3
    b1 = jax.random.normal(k2, (1, hidden), jnp.float32) * 0.1
    w2 = jax.random.normal(k3, (hidden, d_out), jnp.float32) * 0.3
    b2 = jax.random.normal(k4, (1, d_out), jnp.float32) * 0.1

    # Fold the Fixed scatter into layer 1:
    #   fixed_p @ W1 + b1 == p @ (E @ W1) + (c @ W1 + b1)
    w1_eff = embed @ w1                    # (d_in, hidden)
    b1_eff = b1 + cvec @ w1                # (1, hidden)

    # Pad output features to a sublane multiple (8) so the output tile is
    # fully dense; extra rows are zero and sliced off in the wrapper.
    d_out_pad = max(8, pl.cdiv(d_out, 8) * 8)
    w2t = jnp.zeros((d_out_pad, hidden), jnp.float32).at[:d_out, :].set(w2.T)
    b2t = jnp.zeros((d_out_pad, 1), jnp.float32).at[:d_out, :].set(b2.T)

    return dict(
        # raw params (reference path)
        w1=w1, b1=b1, w2=w2, b2=b2,
        # kernel params: transposed so points live on the lane axis
        w1t=jnp.asarray(w1_eff.T),         # (hidden, d_in)
        b1t=jnp.asarray(b1_eff.T),         # (hidden, 1)
        w2t=w2t,                           # (d_out_pad, hidden)
        b2t=b2t,                           # (d_out_pad, 1)
    )


def _choose_tile(n, max_tile=2048):
    """Large 128-multiple tiles, but keep >=2 grid steps when N allows so both
    v7x TensorCores get work (costs one extra ~0.35us step on v5e/v6e)."""
    n128 = pl.cdiv(n, 128)
    if n128 >= 2:
        return min(max_tile, max(1, n128 // 2) * 128)
    return 128


@functools.partial(jax.jit, static_argnames=("tile_n",))
def fixed_forward(p, params, tile_n=None):
    """Apply Fixed(MLP, ...) to points p of shape (N, d_in) via Pallas."""
    N, d_in = p.shape
    w1t, b1t = params["w1t"], params["b1t"]
    w2t, b2t = params["w2t"], params["b2t"]
    hidden = w1t.shape[0]
    d_out = params["w2"].shape[1]          # true (unpadded) output features
    d_out_pad = w2t.shape[0]

    if tile_n is None:
        tile_n = _choose_tile(N)
    n_pad = pl.cdiv(N, tile_n) * tile_n

    # Points on the lane axis; pad N up to a tile multiple (sliced off below).
    pT = p.astype(jnp.float32).T                       # (d_in, N)
    if n_pad != N:
        pT = jnp.pad(pT, ((0, 0), (0, n_pad - N)))

    full = lambda i: (0, 0)   # small resident params: whole-array blocks

    outT = pl.pallas_call(
        _fixed_mlp_kernel,
        out_shape=jax.ShapeDtypeStruct((d_out_pad, n_pad), jnp.float32),
        grid=(n_pad // tile_n,),
        in_specs=[
            pl.BlockSpec((d_in, tile_n), lambda i: (0, i)),    # pT tile
            pl.BlockSpec((hidden, d_in), full),                # W1_eff^T
            pl.BlockSpec((hidden, 1), full),                   # b1_eff^T
            pl.BlockSpec((d_out_pad, hidden), full),           # W2^T (padded)
            pl.BlockSpec((d_out_pad, 1), full),                # b2^T (padded)
        ],
        out_specs=pl.BlockSpec((d_out_pad, tile_n), lambda i: (0, i)),
        compiler_params=pltpu.CompilerParams(
            dimension_semantics=("parallel",)),
    )(pT, w1t, b1t, w2t, b2t)

    return outT[:d_out, :N].T                             # (N, d_out)


# Pure-JAX reference (mirrors the PyTorch Fixed.forward + MLP exactly).
def fixed_forward_ref(p, params, idx, values):
    N, d_in = p.shape
    total = d_in + len(idx)
    fixed_p = jnp.zeros((N, total), p.dtype)
    fixed_p = fixed_p.at[:, jnp.array(idx)].set(
        jnp.array(values, p.dtype)[None, :])
    mask = jnp.ones((total,), bool).at[jnp.array(idx)].set(False)
    free_cols = jnp.nonzero(mask, size=d_in)[0]
    fixed_p = fixed_p.at[:, free_cols].set(p)
    h = jnp.tanh(fixed_p @ params["w1"] + params["b1"])
    return h @ params["w2"] + params["b2"]


if __name__ == "__main__":
    # Small shapes: 2-D points, 1 fixed feature -> 3 total inputs,
    # hidden 32, 4 output features.
    N, D_IN, HIDDEN, D_OUT = 256, 2, 32, 4
    IDX = (1,)            # fix input feature at column 1
    VALUES = (0.5,)

    key = jax.random.PRNGKey(0)
    kp, kp2, kparams = jax.random.split(key, 3)
    params = make_fixed_module(IDX, VALUES, D_IN, HIDDEN, D_OUT, kparams)

    # Case 1: N multiple of 128 (grid of 2 tiles).
    p = jax.random.normal(kp, (N, D_IN), jnp.float32)
    out = jax.block_until_ready(fixed_forward(p, params))
    ref = fixed_forward_ref(p, params, IDX, VALUES)
    assert out.shape == (N, D_OUT)
    assert jnp.allclose(out, ref, atol=1e-5, rtol=1e-5)

    # Case 2: ragged N (exercises in-wrapper padding + slice).
    N2 = 200
    p2 = jax.random.normal(kp2, (N2, D_IN), jnp.float32)
    out2 = jax.block_until_ready(fixed_forward(p2, params))
    ref2 = fixed_forward_ref(p2, params, IDX, VALUES)
    assert out2.shape == (N2, D_OUT)
    assert jnp.allclose(out2, ref2, atol=1e-5, rtol=1e-5)

    print("KERNEL_OK")
</pallas_src>

<mosaic_0001>
module attributes {stable_mosaic.version = 11 : i64} {
  func.func @_fixed_mlp_kernel(%arg0: i32, %arg1: memref<2x128xf32, #tpu.memory_space<vmem>>, %arg2: memref<32x2xf32, #tpu.memory_space<vmem>>, %arg3: memref<32x1xf32, #tpu.memory_space<vmem>>, %arg4: memref<8x32xf32, #tpu.memory_space<vmem>>, %arg5: memref<8x1xf32, #tpu.memory_space<vmem>>, %arg6: memref<8x128xf32, #tpu.memory_space<vmem>>) attributes {dimension_semantics = [#tpu.dimension_semantics<parallel>], iteration_bounds = array<i64: 2>, scalar_prefetch = 0 : i64, scratch_operands = 0 : i64, tpu.core_type = #tpu.core_type<tc>, window_params = [{transform_indices = @transform_0, window_bounds = array<i64: 2, 128>}, {pipeline_mode = #tpu.pipeline_mode<synchronous>, transform_indices = @transform_1, window_bounds = array<i64: 32, 2>}, {pipeline_mode = #tpu.pipeline_mode<synchronous>, transform_indices = @transform_2, window_bounds = array<i64: 32, 1>}, {pipeline_mode = #tpu.pipeline_mode<synchronous>, transform_indices = @transform_3, window_bounds = array<i64: 8, 32>}, {pipeline_mode = #tpu.pipeline_mode<synchronous>, transform_indices = @transform_4, window_bounds = array<i64: 8, 1>}, {transform_indices = @transform_5, window_bounds = array<i64: 8, 128>}]} {
    %c0 = arith.constant 0 : index
    %c0_0 = arith.constant 0 : index
    %0 = vector.load %arg1[%c0, %c0_0] : memref<2x128xf32, #tpu.memory_space<vmem>>, vector<2x128xf32>
    %c0_1 = arith.constant 0 : index
    %c0_2 = arith.constant 0 : index
    %1 = vector.load %arg2[%c0_1, %c0_2] : memref<32x2xf32, #tpu.memory_space<vmem>>, vector<32x2xf32>
    %c0_3 = arith.constant 0 : index
    %c0_4 = arith.constant 0 : index
    %2 = vector.load %arg3[%c0_3, %c0_4] : memref<32x1xf32, #tpu.memory_space<vmem>>, vector<32x1xf32>
    %3 = vector.extract_strided_slice %1 {offsets = [0, 0], sizes = [32, 1], strides = [1, 1]} : vector<32x2xf32> to vector<32x1xf32>
    %4 = vector.extract_strided_slice %0 {offsets = [0, 0], sizes = [1, 128], strides = [1, 1]} : vector<2x128xf32> to vector<1x128xf32>
    %5 = vector.broadcast %3 : vector<32x1xf32> to vector<32x128xf32>
    %6 = vector.broadcast %4 : vector<1x128xf32> to vector<32x128xf32>
    %7 = arith.mulf %5, %6 : vector<32x128xf32>
    %8 = vector.broadcast %2 : vector<32x1xf32> to vector<32x128xf32>
    %9 = arith.addf %8, %7 : vector<32x128xf32>
    %10 = vector.extract_strided_slice %1 {offsets = [0, 1], sizes = [32, 1], strides = [1, 1]} : vector<32x2xf32> to vector<32x1xf32>
    %11 = vector.extract_strided_slice %0 {offsets = [1, 0], sizes = [1, 128], strides = [1, 1]} : vector<2x128xf32> to vector<1x128xf32>
    %12 = vector.broadcast %10 : vector<32x1xf32> to vector<32x128xf32>
    %13 = vector.broadcast %11 : vector<1x128xf32> to vector<32x128xf32>
    %14 = arith.mulf %12, %13 : vector<32x128xf32>
    %15 = arith.addf %9, %14 : vector<32x128xf32>
    %16 = math.tanh %15 : vector<32x128xf32>
    %c0_5 = arith.constant 0 : index
    %c0_6 = arith.constant 0 : index
    %17 = vector.load %arg4[%c0_5, %c0_6] : memref<8x32xf32, #tpu.memory_space<vmem>>, vector<8x32xf32>
    %cst = arith.constant dense<0.000000e+00> : vector<8x128xf32>
    %18 = tpu.matmul %17, %16, %cst {dimension_numbers = #tpu.dot_dimension_numbers<[1], [0], [0], [1], [0, 0, 1, 1], [], []>} : vector<8x32xf32>, vector<32x128xf32>, vector<8x128xf32> -> vector<8x128xf32>
    %c0_7 = arith.constant 0 : index
    %c0_8 = arith.constant 0 : index
    %19 = vector.load %arg5[%c0_7, %c0_8] : memref<8x1xf32, #tpu.memory_space<vmem>>, vector<8x1xf32>
    %20 = vector.broadcast %19 : vector<8x1xf32> to vector<8x128xf32>
    %21 = arith.addf %18, %20 : vector<8x128xf32>
    %c0_9 = arith.constant 0 : index
    %c0_10 = arith.constant 0 : index
    %22 = vector.load %arg6[%c0_9, %c0_10] : memref<8x128xf32, #tpu.memory_space<vmem>>, vector<8x128xf32>
    tpu.vector_store %arg6[%c0_9, %c0_10], %21 {strides = array<i32>} : memref<8x128xf32, #tpu.memory_space<vmem>>, vector<8x128xf32>,
    return
  }
  func.func @transform_0(%arg0: i32) -> (i32, i32) {
    %c0_i32 = arith.constant 0 : i32
    %c0_i32_0 = arith.constant 0 : i32
    return %c0_i32, %arg0 : i32, i32
  }
  func.func @transform_1(%arg0: i32) -> (i32, i32) {
    %c0_i32 = arith.constant 0 : i32
    %c0_i32_0 = arith.constant 0 : i32
    %c0_i32_1 = arith.constant 0 : i32
    return %c0_i32, %c0_i32_0 : i32, i32
  }
  func.func @transform_2(%arg0: i32) -> (i32, i32) {
    %c0_i32 = arith.constant 0 : i32
    %c0_i32_0 = arith.constant 0 : i32
    %c0_i32_1 = arith.constant 0 : i32
    return %c0_i32, %c0_i32_0 : i32, i32
  }
  func.func @transform_3(%arg0: i32) -> (i32, i32) {
    %c0_i32 = arith.constant 0 : i32
    %c0_i32_0 = arith.constant 0 : i32
    %c0_i32_1 = arith.constant 0 : i32
    return %c0_i32, %c0_i32_0 : i32, i32
  }
  func.func @transform_4(%arg0: i32) -> (i32, i32) {
    %c0_i32 = arith.constant 0 : i32
    %c0_i32_0 = arith.constant 0 : i32
    %c0_i32_1 = arith.constant 0 : i32
    return %c0_i32, %c0_i32_0 : i32, i32
  }
  func.func @transform_5(%arg0: i32) -> (i32, i32) {
    %c0_i32 = arith.constant 0 : i32
    %c0_i32_0 = arith.constant 0 : i32
    return %c0_i32, %arg0 : i32, i32
  }
}

</mosaic_0001>

<llo_original>
// kernel: fixed_forward.1
$region0: #{fixed_forward.1}
  #allocation0 [shape = 'u32[]', space=smem, size = 0x4, offset = 0x4, fixed_abs, tag = 'smem constant byte address 0x4 - core index']
  #allocation1 [shape = 'u32[144,128]{1,0:T(1,128)}', space=vmem, size = 0x12000, scoped, tag = 'internal scratch']
  %s0 = inlined_call_operand.vmem [shape: f32[2,256], index: 0, kind: input, shape index: {}]
  %s1 = inlined_call_operand.vmem [shape: f32[32,2], index: 1, kind: input, shape index: {}]
  %s2 = inlined_call_operand.vmem [shape: f32[32,1], index: 2, kind: input, shape index: {}]
  %s3 = inlined_call_operand.vmem [shape: f32[8,32], index: 3, kind: input, shape index: {}]
  %s4 = inlined_call_operand.vmem [shape: f32[8,1], index: 4, kind: input, shape index: {}]
  %s5 = inlined_call_operand.vmem [shape: f32[8,256], index: 5, kind: output, shape index: {}]
  %s6 = sld [smem:[#allocation0]]
  $region53: #{fixed_forward.1} parent=0
    _
  %s8 = ssub.s32 1, %s6
  %s9 = scalar_select 0, %s8, %s6
  loop: start=0, step=1, limit=4
  $region2: #{fixed_forward.1} parent=0 // loop_pre_header
    _
  $region3: #{fixed_forward.1} parent=0 // loop_header
    %s11 = sphi 0, %s15
    %p12 = scmp.ge.s32.totalorder %s11, 4
    %s21 = sphi 0, %s23
    %s24 = sphi 0, %s21
    %s25 = sphi 0, %s24
    %s41 = sphi 0, %s25
    %s45 = sphi 0, %s45
    %s47 = sphi 0, %s45
    %s48 = sphi 0, %s47
    %s62 = sphi 0, %s48
    %s66 = sphi 0, %s66
    %s68 = sphi 0, %s66
    %s69 = sphi 0, %s68
    %s83 = sphi 0, %s69
    %s87 = sphi 0, %s87
    %s89 = sphi 0, %s87
    %s90 = sphi 0, %s89
    %s104 = sphi 0, %s90
    %s108 = sphi 0, %s108
    %s110 = sphi 0, %s108
    %s111 = sphi 0, %s110
    %s125 = sphi 0, %s111
    %s131 = sphi 0, %s133
    %s134 = sphi 0, %s131
    %s135 = sphi 0, %s134
    %s151 = sphi 0, %s135
  $region4: #{fixed_forward.1} parent=0 // loop_header_branch
    %14 = sbr.rel (%p12) target = $region8
  $region5: #{fixed_forward.1} parent=0 // loop_body
    %s16 = ssub.s32 %s11, 1
    %s17 = ssub.s32 %s11, 2
    %s18 = sadd.s32 %s11, 1
    %s19 = ssub.s32 %s11, %s18
    %p20 = scmp.eq.s32.totalorder %s19, 0
    %s22 = sadd.s32 %s21, 1
    %s23 = scalar_select %p20, %s21, %s22
    %p26 = pneg %p20
    %p27 = scmp.eq.s32.totalorder %s11, 1
    %p28 = por %p26, %p27
    %p29 = scmp.ne.s32.totalorder %s21, %s24
    %p30 = scmp.eq.s32.totalorder %s11, 0
    %p31 = por %p29, %p30
    %p32 = scmp.ne.s32.totalorder %s21, %s24
    %p33 = scmp.eq.s32.totalorder %s16, 1
    %p34 = por %p32, %p33
    %p35 = scmp.ne.s32.totalorder %s24, %s25
    %p36 = scmp.eq.s32.totalorder %s16, 0
    %p37 = por %p35, %p36
    %p38 = scmp.ne.s32.totalorder %s24, %s25
    %p39 = scmp.eq.s32.totalorder %s17, 1
    %p40 = por %p38, %p39
    %p42 = scmp.ne.s32.totalorder %s25, %s41
    %p43 = scmp.eq.s32.totalorder %s17, 0
    %p44 = por %p42, %p43
    %s46 = sadd.s32 %s45, 1
    %p49 = scmp.eq.s32.totalorder %s11, 1
    %p50 = scmp.ne.s32.totalorder %s45, %s47
    %p51 = scmp.eq.s32.totalorder %s11, 0
    %p52 = por %p50, %p51
    %p53 = scmp.ne.s32.totalorder %s45, %s47
    %p54 = scmp.eq.s32.totalorder %s16, 1
    %p55 = por %p53, %p54
    %p56 = scmp.ne.s32.totalorder %s47, %s48
    %p57 = scmp.eq.s32.totalorder %s16, 0
    %p58 = por %p56, %p57
    %p59 = scmp.ne.s32.totalorder %s47, %s48
    %p60 = scmp.eq.s32.totalorder %s17, 1
    %p61 = por %p59, %p60
    %p63 = scmp.ne.s32.totalorder %s48, %s62
    %p64 = scmp.eq.s32.totalorder %s17, 0
    %p65 = por %p63, %p64
    %s67 = sadd.s32 %s66, 1
    %p70 = scmp.eq.s32.totalorder %s11, 1
    %p71 = scmp.ne.s32.totalorder %s66, %s68
    %p72 = scmp.eq.s32.totalorder %s11, 0
    %p73 = por %p71, %p72
    %p74 = scmp.ne.s32.totalorder %s66, %s68
    %p75 = scmp.eq.s32.totalorder %s16, 1
    %p76 = por %p74, %p75
    %p77 = scmp.ne.s32.totalorder %s68, %s69
    %p78 = scmp.eq.s32.totalorder %s16, 0
    %p79 = por %p77, %p78
    %p80 = scmp.ne.s32.totalorder %s68, %s69
    %p81 = scmp.eq.s32.totalorder %s17, 1
    %p82 = por %p80, %p81
    %p84 = scmp.ne.s32.totalorder %s69, %s83
    %p85 = scmp.eq.s32.totalorder %s17, 0
    %p86 = por %p84, %p85
    %s88 = sadd.s32 %s87, 1
    %p91 = scmp.eq.s32.totalorder %s11, 1
    %p92 = scmp.ne.s32.totalorder %s87, %s89
    %p93 = scmp.eq.s32.totalorder %s11, 0
    %p94 = por %p92, %p93
    %p95 = scmp.ne.s32.totalorder %s87, %s89
    %p96 = scmp.eq.s32.totalorder %s16, 1
    %p97 = por %p95, %p96
    %p98 = scmp.ne.s32.totalorder %s89, %s90
    %p99 = scmp.eq.s32.totalorder %s16, 0
    %p100 = por %p98, %p99
    %p101 = scmp.ne.s32.totalorder %s89, %s90
    %p102 = scmp.eq.s32.totalorder %s17, 1
    %p103 = por %p101, %p102
    %p105 = scmp.ne.s32.totalorder %s90, %s104
    %p106 = scmp.eq.s32.totalorder %s17, 0
    %p107 = por %p105, %p106
    %s109 = sadd.s32 %s108, 1
    %p112 = scmp.eq.s32.totalorder %s11, 1
    %p113 = scmp.ne.s32.totalorder %s108, %s110
    %p114 = scmp.eq.s32.totalorder %s11, 0
    %p115 = por %p113, %p114
    %p116 = scmp.ne.s32.totalorder %s108, %s110
    %p117 = scmp.eq.s32.totalorder %s16, 1
    %p118 = por %p116, %p117
    %p119 = scmp.ne.s32.totalorder %s110, %s111
    %p120 = scmp.eq.s32.totalorder %s16, 0
    %p121 = por %p119, %p120
    %p122 = scmp.ne.s32.totalorder %s110, %s111
    %p123 = scmp.eq.s32.totalorder %s17, 1
    %p124 = por %p122, %p123
    %p126 = scmp.ne.s32.totalorder %s111, %s125
    %p127 = scmp.eq.s32.totalorder %s17, 0
    %p128 = por %p126, %p127
    %s129 = ssub.s32 %s11, %s18
    %p130 = scmp.eq.s32.totalorder %s129, 0
    %s132 = sadd.s32 %s131, 1
    %s133 = scalar_select %p130, %s131, %s132
    %p136 = pneg %p130
    %p137 = scmp.eq.s32.totalorder %s11, 1
    %p138 = por %p136, %p137
    %p139 = scmp.ne.s32.totalorder %s131, %s134
    %p140 = scmp.eq.s32.totalorder %s11, 0
    %p141 = por %p139, %p140
    %p142 = scmp.ne.s32.totalorder %s131, %s134
    %p143 = scmp.eq.s32.totalorder %s16, 1
    %p144 = por %p142, %p143
    %p145 = scmp.ne.s32.totalorder %s134, %s135
    %p146 = scmp.eq.s32.totalorder %s16, 0
    %p147 = por %p145, %p146
    %p148 = scmp.ne.s32.totalorder %s134, %s135
    %p149 = scmp.eq.s32.totalorder %s17, 1
    %p150 = por %p148, %p149
    %p152 = scmp.ne.s32.totalorder %s135, %s151
    %p153 = scmp.eq.s32.totalorder %s17, 0
    %p154 = por %p152, %p153
    %p155 = scmp.le.s32.totalorder 1, %s11
    %p156 = scmp.lt.s32.totalorder %s11, 3
    %p157 = pnand %p155, %p156
    %p158 = pneg %p157
    // Predicated region
    $region9: #{fixed_forward.1} parent=5 // pred_check
      _
    $region10: #{fixed_forward.1} parent=5 // pred_check_branch
      %160 = sbr.rel (%p157) target = $region12
    $region11: #{fixed_forward.1} parent=5 // pred_region
      %s161 = ssub.s32 %s11, 1
      // Predicated region
      $region13: #{fixed_forward.1} parent=11 // pred_check
        %p162 = pneg %p58
      $region14: #{fixed_forward.1} parent=11 // pred_check_branch
        %164 = sbr.rel (%p162) target = $region16
      $region15: #{fixed_forward.1} parent=11 // pred_region
        _
      $region16: #{fixed_forward.1} parent=11 // pred_fallthru
        _
      // Predicated region
      $region17: #{fixed_forward.1} parent=11 // pred_check
        %p165 = pneg %p79
      $region18: #{fixed_forward.1} parent=11 // pred_check_branch
        %167 = sbr.rel (%p165) target = $region20
      $region19: #{fixed_forward.1} parent=11 // pred_region
        _
      $region20: #{fixed_forward.1} parent=11 // pred_fallthru
        _
      // Predicated region
      $region21: #{fixed_forward.1} parent=11 // pred_check
        %p168 = pneg %p100
      $region22: #{fixed_forward.1} parent=11 // pred_check_branch
        %170 = sbr.rel (%p168) target = $region24
      $region23: #{fixed_forward.1} parent=11 // pred_region
        _
      $region24: #{fixed_forward.1} parent=11 // pred_fallthru
        _
      // Predicated region
      $region25: #{fixed_forward.1} parent=11 // pred_check
        %p171 = pneg %p121
      $region26: #{fixed_forward.1} parent=11 // pred_check_branch
        %173 = sbr.rel (%p171) target = $region28
      $region27: #{fixed_forward.1} parent=11 // pred_region
        _
      $region28: #{fixed_forward.1} parent=11 // pred_fallthru
        _
    $region12: #{fixed_forward.1} parent=5 // pred_fallthru
      _
    %p174 = scmp.lt.s32.totalorder %s11, 2
    // Predicated region
    $region29: #{fixed_forward.1} parent=5 // pred_check
      %p175 = pneg %p174
    $region30: #{fixed_forward.1} parent=5 // pred_check_branch
      %177 = sbr.rel (%p175) target = $region32
    $region31: #{fixed_forward.1} parent=5 // pred_region
      // Predicated region
      $region33: #{fixed_forward.1} parent=31 // pred_check
        %p178 = pneg %p31
      $region34: #{fixed_forward.1} parent=31 // pred_check_branch
        %180 = sbr.rel (%p178) target = $region36
      $region35: #{fixed_forward.1} parent=31 // pred_region
        %p181 = scmp.lt.s32.totalorder %s11, 1
        %s182 = scalar_select %p181, %s11, 1
        %s183 = smul.addr %s182, 2
        %s184 = scalar_lea.vmem %s0, %s183
      $region36: #{fixed_forward.1} parent=31 // pred_fallthru
        _
    $region32: #{fixed_forward.1} parent=5 // pred_fallthru
      _
    %p185 = scmp.le.s32.totalorder 1, %s11
    %p186 = scmp.lt.s32.totalorder %s11, 3
    %p187 = pnand %p185, %p186
    %p188 = pneg %p187
    // Predicated region
    $region37: #{fixed_forward.1} parent=5 // pred_check
      _
    $region38: #{fixed_forward.1} parent=5 // pred_check_branch
      %190 = sbr.rel (%p187) target = $region40
    $region39: #{fixed_forward.1} parent=5 // pred_region
      %s191 = ssub.s32 %s11, 1
      %p192 = scmp.lt.s32.totalorder %s16, 1
      %s193 = scalar_select %p192, %s16, 1
      %s194 = smul.addr %s193, 2
      %s195 = scalar_lea.vmem %s0, %s194
      %p196 = pneg %p37
      %p197 = pneg %p34
      %p198 = pneg %p58
      %p199 = pneg %p55
      %p200 = pneg %p79
      %p201 = pneg %p76
      %p202 = pneg %p100
      %p203 = pneg %p97
      %p204 = pneg %p121
      %p205 = pneg %p118
      %p206 = pneg %p147
      %p207 = pneg %p144
      %p208 = scmp.lt.s32.totalorder %s16, 1
      %s209 = scalar_select %p208, %s16, 1
      %s210 = smul.addr %s209, 8
      %s211 = scalar_lea.vmem %s5, %s210
      %p212 = scmp.lt.s32.totalorder %s16, 1
      %s213 = scalar_select %p212, %s16, 1
      %s214 = smul.addr %s213, 2
      %s215 = scalar_lea.vmem %s0, %s214
      %p216 = scmp.lt.s32.totalorder %s16, 1
      %s217 = scalar_select %p216, %s16, 1
      %s218 = smul.addr %s217, 8
      %s219 = scalar_lea.vmem %s5, %s218
      %v220 = vld [vmem:[%s215] sm:$0x3]
      %v221 = vld [vmem:[%s1] sm:$0xff]
      %v222 = vld [vmem:[%s1 + $0x8] sm:$0xff]
      %v223 = vld [vmem:[%s1 + $0x10] sm:$0xff]
      %v224 = vld [vmem:[%s1 + $0x18] sm:$0xff]
      %v225 = vld [vmem:[%s2] sm:$0xff]
      %v226 = vld [vmem:[%s2 + $0x8] sm:$0xff]
      %v227 = vld [vmem:[%s2 + $0x10] sm:$0xff]
      %v228 = vld [vmem:[%s2 + $0x18] sm:$0xff]
      %230 = vset.pattern.permute.xlu0 0
      %231 = vperm.xlu0 %230, %v221
      %v232 = vpop.permute.xlu0 %231
      %235 = vset.pattern.permute.xlu0 0
      %236 = vperm.xlu0 %235, %v222
      %v237 = vpop.permute.xlu0 %236
      %240 = vset.pattern.permute.xlu0 0
      %241 = vperm.xlu0 %240, %v223
      %v242 = vpop.permute.xlu0 %241
      %245 = vset.pattern.permute.xlu0 0
      %246 = vperm.xlu0 %245, %v224
      %v247 = vpop.permute.xlu0 %246
      %v249 = vlaneseq
      %v250 = vshrl.u32 %v249, 7
      %v251 = vsub.s32 0, %v250
      %v252 = vrot.slane %v220, %v251
      %v253 = vmul.f32 %v232, %v252
      %v254 = vmul.f32 %v237, %v252
      %v255 = vmul.f32 %v242, %v252
      %v256 = vmul.f32 %v247, %v252
      %258 = vset.pattern.permute.xlu0 0
      %259 = vperm.xlu0 %258, %v225
      %v260 = vpop.permute.xlu0 %259
      %263 = vset.pattern.permute.xlu0 0
      %264 = vperm.xlu0 %263, %v226
      %v265 = vpop.permute.xlu0 %264
      %268 = vset.pattern.permute.xlu0 0
      %269 = vperm.xlu0 %268, %v227
      %v270 = vpop.permute.xlu0 %269
      %273 = vset.pattern.permute.xlu0 0
      %274 = vperm.xlu0 %273, %v228
      %v275 = vpop.permute.xlu0 %274
      %v277 = vadd.f32 %v260, %v253
      %v278 = vadd.f32 %v265, %v254
      %v279 = vadd.f32 %v270, %v255
      %v280 = vadd.f32 %v275, %v256
      %281 = vset.pattern.permute.xlu0 1
      %282 = vperm.xlu0 %281, %v221
      %v283 = vpop.permute.xlu0 %282
      %285 = vset.pattern.permute.xlu0 1
      %286 = vperm.xlu0 %285, %v222
      %v287 = vpop.permute.xlu0 %286
      %289 = vset.pattern.permute.xlu0 1
      %290 = vperm.xlu0 %289, %v223
      %v291 = vpop.permute.xlu0 %290
      %293 = vset.pattern.permute.xlu0 1
      %294 = vperm.xlu0 %293, %v224
      %v295 = vpop.permute.xlu0 %294
      %v297 = vlaneseq
      %v298 = vshrl.u32 %v297, 7
      %v299 = vsub.s32 1, %v298
      %v300 = vrot.slane %v220, %v299
      %v301 = vmul.f32 %v283, %v300
      %v302 = vmul.f32 %v287, %v300
      %v303 = vmul.f32 %v291, %v300
      %v304 = vmul.f32 %v295, %v300
      %v305 = vadd.f32 %v277, %v301
      %v306 = vadd.f32 %v278, %v302
      %v307 = vadd.f32 %v279, %v303
      %v308 = vadd.f32 %v280, %v304
      %v309 = vtanh.pop %v305
      %v310 = vtanh.pop %v306
      %v311 = vtanh.pop %v307
      %v312 = vtanh.pop %v308
      %v313 = vld [vmem:[%s3] sm:$0xff]
      %v314 = vld [vmem:[%s4] sm:$0xff]
      %316 = vset.pattern.permute.xlu0 0
      %317 = vperm.xlu0 %316, %v314
      %v318 = vpop.permute.xlu0 %317
      %vm320 = vcmask 261120
      %v322 = vsel %vm320, %v313, 0
      %324 = vmatprep.subr.mxu0 0.0
      %325 = vmatpush1.msra.mxu0 %v309
      %326 = vmatprep.subr.mxu0 0.0
      %327 = vmatpush1.msra.mxu0 %v310
      %328 = vmatprep.subr.mxu0 0.0
      %329 = vmatpush1.msra.mxu0 %v311
      %330 = vmatprep.subr.mxu0 0.0
      %331 = vmatpush1.msra.mxu0 %v312
      %332 = vmatprep.subr.mxu0 0.0
      %333 = vmatpush1.msra.mxu0 0.0
      %334 = vmatprep.subr.mxu0 0.0
      %335 = vmatpush1.msra.mxu0 0.0
      %336 = vmatprep.subr.mxu0 0.0
      %337 = vmatpush1.msra.mxu0 0.0
      %338 = vmatprep.subr.mxu0 0.0
      %339 = vmatpush1.msra.mxu0 0.0
      %340 = vmatprep.subr.mxu0 0.0
      %341 = vmatpush1.msra.mxu0 0.0
      %342 = vmatprep.subr.mxu0 0.0
      %343 = vmatpush1.msra.mxu0 0.0
      %344 = vmatprep.subr.mxu0 0.0
      %345 = vmatpush1.msra.mxu0 0.0
      %346 = vmatprep.subr.mxu0 0.0
      %347 = vmatpush1.msra.mxu0 0.0
      %348 = vmatprep.subr.mxu0 0.0
      %349 = vmatpush1.msra.mxu0 0.0
      %350 = vmatprep.subr.mxu0 0.0
      %351 = vmatpush1.msra.mxu0 0.0
      %352 = vmatprep.subr.mxu0 0.0
      %353 = vmatpush1.msra.mxu0 0.0
      %354 = vmatprep.subr.mxu0 0.0
      %355 = vmatpush1.msra.mxu0 0.0
      %356 = vmatprep.subr.mxu0 0.0
      %357 = vmatpush1.msra.mxu0 0.0
      %358 = vmatprep.subr.mxu0 0.0
      %359 = vmatpush1.msra.mxu0 0.0
      %360 = vmatprep.subr.mxu0 0.0
      %361 = vmatpush1.msra.mxu0 0.0
      %362 = vmatprep.subr.mxu0 0.0
      %363 = vmatpush1.msra.mxu0 0.0
      %364 = vmatprep.subr.mxu0 0.0
      %365 = vmatpush1.msra.mxu0 0.0
      %366 = vmatprep.subr.mxu0 0.0
      %367 = vmatpush1.msra.mxu0 0.0
      %368 = vmatprep.subr.mxu0 0.0
      %369 = vmatpush1.msra.mxu0 0.0
      %370 = vmatprep.subr.mxu0 0.0
      %371 = vmatpush1.msra.mxu0 0.0
      %372 = vmatprep.subr.mxu0 0.0
      %373 = vmatpush1.msra.mxu0 0.0
      %374 = vmatprep.subr.mxu0 0.0
      %375 = vmatpush1.msra.mxu0 0.0
      %376 = vmatprep.subr.mxu0 0.0
      %377 = vmatpush1.msra.mxu0 0.0
      %378 = vmatprep.subr.mxu0 0.0
      %379 = vmatpush1.msra.mxu0 0.0
      %380 = vmatprep.subr.mxu0 0.0
      %381 = vmatpush1.msra.mxu0 0.0
      %382 = vmatprep.subr.mxu0 0.0
      %383 = vmatpush1.msra.mxu0 0.0
      %384 = vmatprep.subr.mxu0 0.0
      %385 = vmatpush1.msra.mxu0 0.0
      %386 = vmatprep.subr.mxu0 0.0
      %387 = vmatpush1.msra.mxu0 0.0
      %388 = vmatprep.mubr.f32.mxu0 0.0
      %389 = vmatmul.mubr.f32.gmra.mrb[0].mxu0 %v322
      %v390 = vpop.f32.mrb[0].mxu0
      %v391 = vadd.f32 %v318, %v390
      %v392 = vpop.f32.mrb[0].mxu0
      %393 = vdwg.mxu0
      %394 = vst [vmem:[%s219] sm:$0xff] %v391
      %p395 = scmp.lt.s32.totalorder %s16, 1
      %s396 = scalar_select %p395, %s16, 1
      %s397 = smul.addr %s396, 8
      %s398 = scalar_lea.vmem %s5, %s397
      // Predicated region
      $region41: #{fixed_forward.1} parent=39 // pred_check
        %p399 = pneg %p144
      $region42: #{fixed_forward.1} parent=39 // pred_check_branch
        %401 = sbr.rel (%p399) target = $region44
      $region43: #{fixed_forward.1} parent=39 // pred_region
        _
      $region44: #{fixed_forward.1} parent=39 // pred_fallthru
        _
    $region40: #{fixed_forward.1} parent=5 // pred_fallthru
      _
    %p402 = scmp.le.s32.totalorder 2, %s11
    // Predicated region
    $region45: #{fixed_forward.1} parent=5 // pred_check
      %p403 = pneg %p402
    $region46: #{fixed_forward.1} parent=5 // pred_check_branch
      %405 = sbr.rel (%p403) target = $region48
    $region47: #{fixed_forward.1} parent=5 // pred_region
      %s406 = ssub.s32 %s11, 2
      // Predicated region
      $region49: #{fixed_forward.1} parent=47 // pred_check
        %p407 = pneg %p150
      $region50: #{fixed_forward.1} parent=47 // pred_check_branch
        %409 = sbr.rel (%p407) target = $region52
      $region51: #{fixed_forward.1} parent=47 // pred_region
        %p410 = scmp.lt.s32.totalorder %s17, 1
        %s411 = scalar_select %p410, %s17, 1
        %s412 = smul.addr %s411, 8
        %s413 = scalar_lea.vmem %s5, %s412
      $region52: #{fixed_forward.1} parent=47 // pred_fallthru
        _
    $region48: #{fixed_forward.1} parent=5 // pred_fallthru
      _
  $region6: #{fixed_forward.1} parent=0 // loop_footer
    %s15 = sadd.s32 1, %s11
  $region7: #{fixed_forward.1} parent=0 // loop_footer_branch
    %10 = sbr.rel target = $region3
  $region8: #{fixed_forward.1} parent=0 // loop_exit
    _

</llo_original>
